<compile_context>
chip_gen: v5e
topology: v5e:2x2
jax: 0.10.0
libtpu: 0.0.40
codegen_flags: <defaults>
</compile_context>

<pallas_src>
import functools

import jax
import jax.numpy as jnp
from jax.experimental import pallas as pl
from jax.experimental.pallas import tpu as pltpu

_COMPUTE_DTYPE = jnp.bfloat16  # weights/activations stream dtype (f32 accum)


def _round_up(x, m):
    return ((x + m - 1) // m) * m


def _largest_tile(dim_padded, cap, min_tiles=1):
    """Largest multiple-of-128 divisor of dim_padded (itself a multiple of 128)
    with tile <= cap and, if possible, dim_padded // tile >= min_tiles."""
    units = dim_padded // 128
    best = 128
    for t in range(1, units + 1):
        if units % t == 0:
            tile = t * 128
            if tile <= cap and dim_padded // tile >= min_tiles:
                best = tile
    return best


# ----------------------------- Pallas kernels ------------------------------


def _noisy_linear_train_kernel(x_ref, wmu_ref, wsig_ref, eps_in_ref,
                               eps_out_ref, bmu_ref, bsig_ref, beps_ref,
                               o_ref, acc_mu_ref, acc_sig_ref):
    """Grid (M, N, K); K (axis 2) is the reduction axis (last)."""
    k = pl.program_id(2)

    @pl.when(k == 0)
    def _():
        acc_mu_ref[...] = jnp.zeros_like(acc_mu_ref)
        acc_sig_ref[...] = jnp.zeros_like(acc_sig_ref)

    x = x_ref[...]                                   # (tm, tk) bf16
    # Mean-weight matmul on the MXU.
    acc_mu_ref[...] += jnp.dot(x, wmu_ref[...],
                               preferred_element_type=jnp.float32)
    # Rank-1 noise folded into a second matmul: scale x rows by eps_in
    # (tm*tk VPU ops, tiny) instead of rebuilding a (tk, tn) weight tile.
    x_sig = x * eps_in_ref[...]                      # (tm, tk) * (1, tk)
    acc_sig_ref[...] += jnp.dot(x_sig, wsig_ref[...],
                                preferred_element_type=jnp.float32)

    @pl.when(k == pl.num_programs(2) - 1)
    def _():
        bias = bmu_ref[...] + bsig_ref[...] * beps_ref[...]        # (1, tn) f32
        y = acc_mu_ref[...] + acc_sig_ref[...] * eps_out_ref[...] + bias
        o_ref[...] = y.astype(o_ref.dtype)


def _noisy_linear_eval_kernel(x_ref, wmu_ref, bmu_ref, o_ref, acc_ref):
    k = pl.program_id(2)

    @pl.when(k == 0)
    def _():
        acc_ref[...] = jnp.zeros_like(acc_ref)

    acc_ref[...] += jnp.dot(x_ref[...], wmu_ref[...],
                            preferred_element_type=jnp.float32)

    @pl.when(k == pl.num_programs(2) - 1)
    def _():
        o_ref[...] = (acc_ref[...] + bmu_ref[...]).astype(o_ref.dtype)


# ------------------------ One-time parameter layout --------------------------


def prepare_noisy_linear(params, compute_dtype=_COMPUTE_DTYPE):
    """Lay out parameters for the kernel: (K, N) weights padded to lane
    multiples, cast to the streaming dtype.  Run once after init /
    reset_noise / optimizer updates -- NOT inside the forward."""
    N, K = params["weight_mu"].shape
    Kp, Np = _round_up(K, 128), _round_up(N, 128)

    def pad_t(w):  # (N, K) -> (Kp, Np)
        return jnp.pad(w.T, ((0, Kp - K), (0, Np - N)))

    def pad_row(v, L, Lp):
        return jnp.pad(v.reshape(1, L), ((0, 0), (0, Lp - L)))

    return dict(
        weight_mu=pad_t(params["weight_mu"]).astype(compute_dtype),
        weight_sigma=pad_t(params["weight_sigma"]).astype(compute_dtype),
        weight_eps_in=pad_row(params["weight_eps_in"], K, Kp).astype(compute_dtype),
        weight_eps_out=pad_row(params["weight_eps_out"], N, Np).astype(jnp.float32),
        bias_mu=pad_row(params["bias_mu"], N, Np).astype(jnp.float32),
        bias_sigma=pad_row(params["bias_sigma"], N, Np).astype(jnp.float32),
        bias_epsilon=pad_row(params["bias_epsilon"], N, Np).astype(jnp.float32),
    )


# ------------------------------ Host wrapper --------------------------------


@functools.partial(jax.jit,
                   static_argnames=("in_features", "out_features", "training"))
def noisy_linear_forward(x, prep, *, in_features, out_features, training=True):
    B, K = x.shape
    assert K == in_features
    Kp, Np = prep["weight_mu"].shape

    # Tile sizes: tm multiple of 16 (bf16 sublane pack); tk/tn are exact
    # multiple-of-128 divisors of the pre-padded dims so no weight re-padding
    # happens here.  N keeps >=2 tiles when possible (v7x megacore sharding).
    tm = min(_round_up(B, 16), 512)
    Mp = _round_up(B, tm)
    tk = _largest_tile(Kp, 1024)
    tn = _largest_tile(Np, 512, min_tiles=2)
    grid = (Mp // tm, Np // tn, Kp // tk)

    # Only the (tiny) activation is padded / cast per call.
    xp = jnp.pad(x, ((0, Mp - B), (0, Kp - K))).astype(prep["weight_mu"].dtype)

    x_spec = pl.BlockSpec((tm, tk), lambda i, j, k: (i, k))
    w_spec = pl.BlockSpec((tk, tn), lambda i, j, k: (k, j))
    krow_spec = pl.BlockSpec((1, tk), lambda i, j, k: (0, k))
    nrow_spec = pl.BlockSpec((1, tn), lambda i, j, k: (0, j))
    out_spec = pl.BlockSpec((tm, tn), lambda i, j, k: (i, j))

    out_shape = jax.ShapeDtypeStruct((Mp, Np), x.dtype)
    compiler_params = pltpu.CompilerParams(
        dimension_semantics=("parallel", "parallel", "arbitrary"),
        vmem_limit_bytes=48 * 1024 * 1024)

    if training:
        yp = pl.pallas_call(
            _noisy_linear_train_kernel,
            out_shape=out_shape,
            grid_spec=pltpu.PrefetchScalarGridSpec(
                num_scalar_prefetch=0, grid=grid,
                in_specs=[x_spec, w_spec, w_spec, krow_spec, nrow_spec,
                          nrow_spec, nrow_spec, nrow_spec],
                out_specs=out_spec,
                scratch_shapes=[pltpu.VMEM((tm, tn), jnp.float32),
                                pltpu.VMEM((tm, tn), jnp.float32)]),
            compiler_params=compiler_params,
        )(xp, prep["weight_mu"], prep["weight_sigma"], prep["weight_eps_in"],
          prep["weight_eps_out"], prep["bias_mu"], prep["bias_sigma"],
          prep["bias_epsilon"])
    else:
        yp = pl.pallas_call(
            _noisy_linear_eval_kernel,
            out_shape=out_shape,
            grid_spec=pltpu.PrefetchScalarGridSpec(
                num_scalar_prefetch=0, grid=grid,
                in_specs=[x_spec, w_spec, nrow_spec],
                out_specs=out_spec,
                scratch_shapes=[pltpu.VMEM((tm, tn), jnp.float32)]),
            compiler_params=compiler_params,
        )(xp, prep["weight_mu"], prep["bias_mu"])

    return yp[:B, :out_features]


# ------------------- Deterministic parameter construction -------------------


def _transform_noise(x):
    # x.sign() * x.abs().sqrt()
    return jnp.sign(x) * jnp.sqrt(jnp.abs(x))


def init_noisy_linear(key, in_features, out_features,
                      std_init=0.4, noisy_layer_std=0.1):
    k_wmu, k_bmu, k_nin, k_now, k_nob = jax.random.split(key, 5)
    mu_range = 1.0 / jnp.sqrt(jnp.float32(in_features))

    weight_mu = jax.random.uniform(
        k_wmu, (out_features, in_features), jnp.float32,
        minval=-mu_range, maxval=mu_range)
    weight_sigma = jnp.full((out_features, in_features),
                            std_init / jnp.sqrt(jnp.float32(in_features)),
                            jnp.float32)
    bias_mu = jax.random.uniform(
        k_bmu, (out_features,), jnp.float32, minval=-mu_range, maxval=mu_range)
    bias_sigma = jnp.full((out_features,),
                          std_init / jnp.sqrt(jnp.float32(out_features)),
                          jnp.float32)

    # reset_noise(): factored Gaussian noise.  Keep the factored vectors;
    # weight_epsilon = outer(eps_out, eps_in) is rank-1 and is folded into a
    # second matmul inside the kernel instead of being materialized.
    noise_in = noisy_layer_std * jax.random.normal(k_nin, (in_features,))
    noise_out_weight = noisy_layer_std * jax.random.normal(k_now, (out_features,))
    noise_out_bias = noisy_layer_std * jax.random.normal(k_nob, (out_features,))

    return dict(weight_mu=weight_mu, weight_sigma=weight_sigma,
                weight_eps_in=_transform_noise(noise_in),
                weight_eps_out=_transform_noise(noise_out_weight),
                bias_mu=bias_mu, bias_sigma=bias_sigma,
                bias_epsilon=_transform_noise(noise_out_bias))


# ----------------------------------- Main ------------------------------------


if __name__ == "__main__":
    key = jax.random.PRNGKey(0)
    k_param, k_x, k_param2, k_x2 = jax.random.split(key, 4)

    # Small shapes consistent with the module.
    B, in_features, out_features = 8, 32, 64
    params = init_noisy_linear(k_param, in_features, out_features)
    prep = prepare_noisy_linear(params)          # one-time layout, off the hot path
    x = jax.random.normal(k_x, (B, in_features), jnp.float32)

    y_train = jax.block_until_ready(
        noisy_linear_forward(x, prep, in_features=in_features,
                             out_features=out_features, training=True))
    y_eval = jax.block_until_ready(
        noisy_linear_forward(x, prep, in_features=in_features,
                             out_features=out_features, training=False))

    # Pure-JAX f32 reference (reconstruct the full rank-1 weight_epsilon).
    w_eps = jnp.outer(params["weight_eps_out"], params["weight_eps_in"])
    w_eff = params["weight_mu"] + params["weight_sigma"] * w_eps
    b_eff = params["bias_mu"] + params["bias_sigma"] * params["bias_epsilon"]
    ref_train = x @ w_eff.T + b_eff
    ref_eval = x @ params["weight_mu"].T + params["bias_mu"]

    assert y_train.shape == (B, out_features)
    assert y_eval.shape == (B, out_features)
    # bf16 weight/activation streaming -> loosened tolerances vs f32 reference.
    assert jnp.allclose(y_train, ref_train, atol=3e-2, rtol=3e-2)
    assert jnp.allclose(y_eval, ref_eval, atol=3e-2, rtol=3e-2)

    # Larger shape: multi-tile grid (1, 2, 1) -> two parallel N tiles for the
    # v7x megacore, single K step (tk = 1024).
    B2, in2, out2 = 16, 1024, 512
    params2 = init_noisy_linear(k_param2, in2, out2)
    prep2 = prepare_noisy_linear(params2)
    x2 = jax.random.normal(k_x2, (B2, in2), jnp.float32)
    y2 = jax.block_until_ready(
        noisy_linear_forward(x2, prep2, in_features=in2, out_features=out2,
                             training=True))
    w_eps2 = jnp.outer(params2["weight_eps_out"], params2["weight_eps_in"])
    ref2 = (x2 @ (params2["weight_mu"] + params2["weight_sigma"] * w_eps2).T
            + (params2["bias_mu"] + params2["bias_sigma"] * params2["bias_epsilon"]))
    assert y2.shape == (B2, out2)
    assert jnp.allclose(y2, ref2, atol=5e-2, rtol=5e-2)

    print("KERNEL_OK")
</pallas_src>

<mosaic_0001>
module attributes {stable_mosaic.version = 11 : i64} {
  func.func @_noisy_linear_train_kernel(%arg0: i32, %arg1: i32, %arg2: i32, %arg3: memref<16x128xbf16, #tpu.memory_space<vmem>>, %arg4: memref<128x128xbf16, #tpu.memory_space<vmem>>, %arg5: memref<128x128xbf16, #tpu.memory_space<vmem>>, %arg6: memref<1x128xbf16, #tpu.memory_space<vmem>>, %arg7: memref<1x128xf32, #tpu.memory_space<vmem>>, %arg8: memref<1x128xf32, #tpu.memory_space<vmem>>, %arg9: memref<1x128xf32, #tpu.memory_space<vmem>>, %arg10: memref<1x128xf32, #tpu.memory_space<vmem>>, %arg11: memref<16x128xf32, #tpu.memory_space<vmem>>, %arg12: memref<16x128xf32, #tpu.memory_space<vmem>>, %arg13: memref<16x128xf32, #tpu.memory_space<vmem>>) attributes {dimension_semantics = [#tpu.dimension_semantics<parallel>, #tpu.dimension_semantics<parallel>, #tpu.dimension_semantics<arbitrary>], iteration_bounds = array<i64: 1, 1, 1>, scalar_prefetch = 0 : i64, scratch_operands = 2 : i64, tpu.core_type = #tpu.core_type<tc>, window_params = [{transform_indices = @transform_0, window_bounds = array<i64: 16, 128>}, {transform_indices = @transform_1, window_bounds = array<i64: 128, 128>}, {transform_indices = @transform_2, window_bounds = array<i64: 128, 128>}, {transform_indices = @transform_3, window_bounds = array<i64: 1, 128>}, {transform_indices = @transform_4, window_bounds = array<i64: 1, 128>}, {transform_indices = @transform_5, window_bounds = array<i64: 1, 128>}, {transform_indices = @transform_6, window_bounds = array<i64: 1, 128>}, {transform_indices = @transform_7, window_bounds = array<i64: 1, 128>}, {transform_indices = @transform_8, window_bounds = array<i64: 16, 128>}]} {
    %c0_i32 = arith.constant 0 : i32
    %0 = arith.cmpi eq, %arg2, %c0_i32 : i32
    %1 = arith.extui %0 : i1 to i32
    %c0_i32_0 = arith.constant 0 : i32
    %2 = arith.cmpi ne, %1, %c0_i32_0 : i32
    scf.if %2 {
      %cst_19 = arith.constant 0.000000e+00 : f32
      %20 = vector.broadcast %cst_19 : f32 to vector<16x128xf32>
      %c0_20 = arith.constant 0 : index
      %c0_21 = arith.constant 0 : index
      %21 = vector.load %arg12[%c0_20, %c0_21] : memref<16x128xf32, #tpu.memory_space<vmem>>, vector<16x128xf32>
      tpu.vector_store %arg12[%c0_20, %c0_21], %20 {strides = array<i32>} : memref<16x128xf32, #tpu.memory_space<vmem>>, vector<16x128xf32>,
      %cst_22 = arith.constant 0.000000e+00 : f32
      %22 = vector.broadcast %cst_22 : f32 to vector<16x128xf32>
      %c0_23 = arith.constant 0 : index
      %c0_24 = arith.constant 0 : index
      %23 = vector.load %arg13[%c0_23, %c0_24] : memref<16x128xf32, #tpu.memory_space<vmem>>, vector<16x128xf32>
      tpu.vector_store %arg13[%c0_23, %c0_24], %22 {strides = array<i32>} : memref<16x128xf32, #tpu.memory_space<vmem>>, vector<16x128xf32>,
    } else {
    }
    %c0 = arith.constant 0 : index
    %c0_1 = arith.constant 0 : index
    %3 = vector.load %arg3[%c0, %c0_1] : memref<16x128xbf16, #tpu.memory_space<vmem>>, vector<16x128xbf16>
    %c0_2 = arith.constant 0 : index
    %c0_3 = arith.constant 0 : index
    %4 = vector.load %arg12[%c0_2, %c0_3] : memref<16x128xf32, #tpu.memory_space<vmem>>, vector<16x128xf32>
    %c0_4 = arith.constant 0 : index
    %c0_5 = arith.constant 0 : index
    %5 = vector.load %arg4[%c0_4, %c0_5] : memref<128x128xbf16, #tpu.memory_space<vmem>>, vector<128x128xbf16>
    %cst = arith.constant dense<0.000000e+00> : vector<16x128xf32>
    %6 = tpu.matmul %3, %5, %cst {dimension_numbers = #tpu.dot_dimension_numbers<[1], [0], [0], [1], [0, 0, 1, 1], [], []>} : vector<16x128xbf16>, vector<128x128xbf16>, vector<16x128xf32> -> vector<16x128xf32>
    %7 = arith.addf %4, %6 : vector<16x128xf32>
    %c0_6 = arith.constant 0 : index
    %c0_7 = arith.constant 0 : index
    %8 = vector.load %arg12[%c0_6, %c0_7] : memref<16x128xf32, #tpu.memory_space<vmem>>, vector<16x128xf32>
    tpu.vector_store %arg12[%c0_6, %c0_7], %7 {strides = array<i32>} : memref<16x128xf32, #tpu.memory_space<vmem>>, vector<16x128xf32>,
    %c0_8 = arith.constant 0 : index
    %c0_9 = arith.constant 0 : index
    %9 = vector.load %arg6[%c0_8, %c0_9] : memref<1x128xbf16, #tpu.memory_space<vmem>>, vector<1x128xbf16>
    %10 = vector.broadcast %9 : vector<1x128xbf16> to vector<16x128xbf16>
    %11 = arith.mulf %3, %10 : vector<16x128xbf16>
    %c0_10 = arith.constant 0 : index
    %c0_11 = arith.constant 0 : index
    %12 = vector.load %arg13[%c0_10, %c0_11] : memref<16x128xf32, #tpu.memory_space<vmem>>, vector<16x128xf32>
    %c0_12 = arith.constant 0 : index
    %c0_13 = arith.constant 0 : index
    %13 = vector.load %arg5[%c0_12, %c0_13] : memref<128x128xbf16, #tpu.memory_space<vmem>>, vector<128x128xbf16>
    %cst_14 = arith.constant dense<0.000000e+00> : vector<16x128xf32>
    %14 = tpu.matmul %11, %13, %cst_14 {dimension_numbers = #tpu.dot_dimension_numbers<[1], [0], [0], [1], [0, 0, 1, 1], [], []>} : vector<16x128xbf16>, vector<128x128xbf16>, vector<16x128xf32> -> vector<16x128xf32>
    %15 = arith.addf %12, %14 : vector<16x128xf32>
    %c0_15 = arith.constant 0 : index
    %c0_16 = arith.constant 0 : index
    %16 = vector.load %arg13[%c0_15, %c0_16] : memref<16x128xf32, #tpu.memory_space<vmem>>, vector<16x128xf32>
    tpu.vector_store %arg13[%c0_15, %c0_16], %15 {strides = array<i32>} : memref<16x128xf32, #tpu.memory_space<vmem>>, vector<16x128xf32>,
    %c0_i32_17 = arith.constant 0 : i32
    %17 = arith.cmpi eq, %arg2, %c0_i32_17 : i32
    %18 = arith.extui %17 : i1 to i32
    %c0_i32_18 = arith.constant 0 : i32
    %19 = arith.cmpi ne, %18, %c0_i32_18 : i32
    scf.if %19 {
      %c0_19 = arith.constant 0 : index
      %c0_20 = arith.constant 0 : index
      %20 = vector.load %arg8[%c0_19, %c0_20] : memref<1x128xf32, #tpu.memory_space<vmem>>, vector<1x128xf32>
      %c0_21 = arith.constant 0 : index
      %c0_22 = arith.constant 0 : index
      %21 = vector.load %arg9[%c0_21, %c0_22] : memref<1x128xf32, #tpu.memory_space<vmem>>, vector<1x128xf32>
      %c0_23 = arith.constant 0 : index
      %c0_24 = arith.constant 0 : index
      %22 = vector.load %arg10[%c0_23, %c0_24] : memref<1x128xf32, #tpu.memory_space<vmem>>, vector<1x128xf32>
      %23 = arith.mulf %21, %22 : vector<1x128xf32>
      %24 = arith.addf %20, %23 : vector<1x128xf32>
      %c0_25 = arith.constant 0 : index
      %c0_26 = arith.constant 0 : index
      %25 = vector.load %arg12[%c0_25, %c0_26] : memref<16x128xf32, #tpu.memory_space<vmem>>, vector<16x128xf32>
      %c0_27 = arith.constant 0 : index
      %c0_28 = arith.constant 0 : index
      %26 = vector.load %arg13[%c0_27, %c0_28] : memref<16x128xf32, #tpu.memory_space<vmem>>, vector<16x128xf32>
      %c0_29 = arith.constant 0 : index
      %c0_30 = arith.constant 0 : index
      %27 = vector.load %arg7[%c0_29, %c0_30] : memref<1x128xf32, #tpu.memory_space<vmem>>, vector<1x128xf32>
      %28 = vector.broadcast %27 : vector<1x128xf32> to vector<16x128xf32>
      %29 = arith.mulf %26, %28 : vector<16x128xf32>
      %30 = arith.addf %25, %29 : vector<16x128xf32>
      %31 = vector.broadcast %24 : vector<1x128xf32> to vector<16x128xf32>
      %32 = arith.addf %30, %31 : vector<16x128xf32>
      %c0_31 = arith.constant 0 : index
      %c0_32 = arith.constant 0 : index
      %33 = vector.load %arg11[%c0_31, %c0_32] : memref<16x128xf32, #tpu.memory_space<vmem>>, vector<16x128xf32>
      tpu.vector_store %arg11[%c0_31, %c0_32], %32 {strides = array<i32>} : memref<16x128xf32, #tpu.memory_space<vmem>>, vector<16x128xf32>,
    } else {
    }
    return
  }
  func.func @transform_0(%arg0: i32, %arg1: i32, %arg2: i32) -> (i32, i32) {
    %c0_i32 = arith.constant 0 : i32
    return %arg0, %arg2 : i32, i32
  }
  func.func @transform_1(%arg0: i32, %arg1: i32, %arg2: i32) -> (i32, i32) {
    %c0_i32 = arith.constant 0 : i32
    return %arg2, %arg1 : i32, i32
  }
  func.func @transform_2(%arg0: i32, %arg1: i32, %arg2: i32) -> (i32, i32) {
    %c0_i32 = arith.constant 0 : i32
    return %arg2, %arg1 : i32, i32
  }
  func.func @transform_3(%arg0: i32, %arg1: i32, %arg2: i32) -> (i32, i32) {
    %c0_i32 = arith.constant 0 : i32
    %c0_i32_0 = arith.constant 0 : i32
    return %c0_i32, %arg2 : i32, i32
  }
  func.func @transform_4(%arg0: i32, %arg1: i32, %arg2: i32) -> (i32, i32) {
    %c0_i32 = arith.constant 0 : i32
    %c0_i32_0 = arith.constant 0 : i32
    return %c0_i32, %arg1 : i32, i32
  }
  func.func @transform_5(%arg0: i32, %arg1: i32, %arg2: i32) -> (i32, i32) {
    %c0_i32 = arith.constant 0 : i32
    %c0_i32_0 = arith.constant 0 : i32
    return %c0_i32, %arg1 : i32, i32
  }
  func.func @transform_6(%arg0: i32, %arg1: i32, %arg2: i32) -> (i32, i32) {
    %c0_i32 = arith.constant 0 : i32
    %c0_i32_0 = arith.constant 0 : i32
    return %c0_i32, %arg1 : i32, i32
  }
  func.func @transform_7(%arg0: i32, %arg1: i32, %arg2: i32) -> (i32, i32) {
    %c0_i32 = arith.constant 0 : i32
    %c0_i32_0 = arith.constant 0 : i32
    return %c0_i32, %arg1 : i32, i32
  }
  func.func @transform_8(%arg0: i32, %arg1: i32, %arg2: i32) -> (i32, i32) {
    %c0_i32 = arith.constant 0 : i32
    return %arg0, %arg1 : i32, i32
  }
}

</mosaic_0001>

<llo_original>
// kernel: noisy_linear_forward.1
$region0: #{noisy_linear_forward.1}
  #allocation0 [shape = 'u32[]', space=smem, size = 0x4, offset = 0x4, fixed_abs, tag = 'smem constant byte address 0x4 - core index']
  #allocation1 [shape = 'u32[72,128]{1,0:T(1,128)}', space=vmem, size = 0x9000, scoped, tag = 'internal scratch']
  #allocation2 [shape = 'f32[16,128]{1,0:T(8,128)}', space=vmem, size = 0x2000, scoped, tag = 'scratch operand']
  #allocation3 [shape = 'f32[16,128]{1,0:T(8,128)}', space=vmem, size = 0x2000, scoped, tag = 'scratch operand']
  %s0 = inlined_call_operand.vmem [shape: bf16[16,128], index: 0, kind: input, shape index: {}]
  %s1 = inlined_call_operand.hbm [shape: bf16[128,128], index: 1, kind: input, shape index: {}]
  %s2 = inlined_call_operand.hbm [shape: bf16[128,128], index: 2, kind: input, shape index: {}]
  %s3 = inlined_call_operand.vmem [shape: bf16[1,128], index: 3, kind: input, shape index: {}]
  %s4 = inlined_call_operand.vmem [shape: f32[1,128], index: 4, kind: input, shape index: {}]
  %s5 = inlined_call_operand.vmem [shape: f32[1,128], index: 5, kind: input, shape index: {}]
  %s6 = inlined_call_operand.vmem [shape: f32[1,128], index: 6, kind: input, shape index: {}]
  %s7 = inlined_call_operand.vmem [shape: f32[1,128], index: 7, kind: input, shape index: {}]
  %s8 = inlined_call_operand.vmem [shape: f32[16,128], index: 8, kind: output, shape index: {}]
  %s9 = sld [smem:[#allocation0]]
  $region58: #{noisy_linear_forward.1} parent=0
    _
  %s11 = ssub.s32 1, %s9
  %s12 = scalar_select 0, %s11, %s9
  $region1: #{noisy_linear_forward.1} parent=0
    #allocation4 [shape = 'u8[32768]{0}', space=vmem, size = 0x8000, scoped, tag = 'input window, operand 1, single buffered']
    #allocation5 [shape = 's32[1]{0}', space=sflag, size = 0x4, scoped, tag = 'scoped memory for noisy_linear_forward.1']
    #allocation6 [shape = 'u8[32768]{0}', space=vmem, size = 0x8000, scoped, tag = 'input window, operand 2, single buffered']
    #allocation7 [shape = 's32[1]{0}', space=sflag, size = 0x4, scoped, tag = 'scoped memory for noisy_linear_forward.1']
    %13 = vsyncpa [#allocation5], 0
    %14 = vsyncpa [#allocation7], 0
    // Predicated region
    $region2: #{noisy_linear_forward.1} parent=1 // pred_check
      _
    $region3: #{noisy_linear_forward.1} parent=1 // pred_check_branch
      %16 = sbr.rel (0) target = $region5
    $region4: #{noisy_linear_forward.1} parent=1 // pred_region
      _
    $region5: #{noisy_linear_forward.1} parent=1 // pred_fallthru
      _
    // Predicated region
    $region6: #{noisy_linear_forward.1} parent=1 // pred_check
      _
    $region7: #{noisy_linear_forward.1} parent=1 // pred_check_branch
      %18 = sbr.rel (0) target = $region9
    $region8: #{noisy_linear_forward.1} parent=1 // pred_region
      %20 = vsyncadd [#allocation5], 0
      %s21 = sshll.u32 %s1, 4
      %s22 = int_to_ptr.hbm [resolvable:$true] %s21
      %s23 = sshll.u32 [#allocation4], 4
      %s24 = int_to_ptr.vmem [resolvable:$true] %s23
      %29 = dma.hbm_to_vmem [thread:$0]  %s22, 1024, %s24, [#allocation5], 64, 64, 4
    $region9: #{noisy_linear_forward.1} parent=1 // pred_fallthru
      _
    // Predicated region
    $region10: #{noisy_linear_forward.1} parent=1 // pred_check
      _
    $region11: #{noisy_linear_forward.1} parent=1 // pred_check_branch
      %31 = sbr.rel (0) target = $region13
    $region12: #{noisy_linear_forward.1} parent=1 // pred_region
      %33 = vsyncadd [#allocation7], 0
      %s34 = sshll.u32 %s2, 4
      %s35 = int_to_ptr.hbm [resolvable:$true] %s34
      %s36 = sshll.u32 [#allocation6], 4
      %s37 = int_to_ptr.vmem [resolvable:$true] %s36
      %42 = dma.hbm_to_vmem [thread:$0]  %s35, 1024, %s37, [#allocation7], 64, 64, 4
    $region13: #{noisy_linear_forward.1} parent=1 // pred_fallthru
      _
    // Predicated region
    $region14: #{noisy_linear_forward.1} parent=1 // pred_check
      _
    $region15: #{noisy_linear_forward.1} parent=1 // pred_check_branch
      %44 = sbr.rel (0) target = $region17
    $region16: #{noisy_linear_forward.1} parent=1 // pred_region
      _
    $region17: #{noisy_linear_forward.1} parent=1 // pred_fallthru
      _
    // Predicated region
    $region18: #{noisy_linear_forward.1} parent=1 // pred_check
      _
    $region19: #{noisy_linear_forward.1} parent=1 // pred_check_branch
      %46 = sbr.rel (0) target = $region21
    $region20: #{noisy_linear_forward.1} parent=1 // pred_region
      _
    $region21: #{noisy_linear_forward.1} parent=1 // pred_fallthru
      _
    // Predicated region
    $region22: #{noisy_linear_forward.1} parent=1 // pred_check
      _
    $region23: #{noisy_linear_forward.1} parent=1 // pred_check_branch
      %48 = sbr.rel (0) target = $region25
    $region24: #{noisy_linear_forward.1} parent=1 // pred_region
      _
    $region25: #{noisy_linear_forward.1} parent=1 // pred_fallthru
      _
    // Predicated region
    $region26: #{noisy_linear_forward.1} parent=1 // pred_check
      _
    $region27: #{noisy_linear_forward.1} parent=1 // pred_check_branch
      %50 = sbr.rel (0) target = $region29
    $region28: #{noisy_linear_forward.1} parent=1 // pred_region
      _
    $region29: #{noisy_linear_forward.1} parent=1 // pred_fallthru
      _
    // Predicated region
    $region30: #{noisy_linear_forward.1} parent=1 // pred_check
      _
    $region31: #{noisy_linear_forward.1} parent=1 // pred_check_branch
      %52 = sbr.rel (0) target = $region33
    $region32: #{noisy_linear_forward.1} parent=1 // pred_region
      _
    $region33: #{noisy_linear_forward.1} parent=1 // pred_fallthru
      _
    // Predicated region
    $region34: #{noisy_linear_forward.1} parent=1 // pred_check
      _
    $region35: #{noisy_linear_forward.1} parent=1 // pred_check_branch
      %54 = sbr.rel (0) target = $region37
    $region36: #{noisy_linear_forward.1} parent=1 // pred_region
      %56 = dma.done [#allocation5], 1024
    $region37: #{noisy_linear_forward.1} parent=1 // pred_fallthru
      _
    // Predicated region
    $region38: #{noisy_linear_forward.1} parent=1 // pred_check
      _
    $region39: #{noisy_linear_forward.1} parent=1 // pred_check_branch
      %58 = sbr.rel (0) target = $region41
    $region40: #{noisy_linear_forward.1} parent=1 // pred_region
      %60 = dma.done [#allocation7], 1024
    $region41: #{noisy_linear_forward.1} parent=1 // pred_fallthru
      _
    %p61 = scmp.eq.s32.totalorder 0, 0
    // Predicated region
    $region42: #{noisy_linear_forward.1} parent=1 // pred_check
      %p62 = pneg %p61
    $region43: #{noisy_linear_forward.1} parent=1 // pred_check_branch
      %64 = sbr.rel (%p62) target = $region45
    $region44: #{noisy_linear_forward.1} parent=1 // pred_region
      %65 = vst [vmem:[#allocation2] sm:$0xff] 0.0
      %66 = vst [vmem:[#allocation2 + $0x8] sm:$0xff] 0.0
      %67 = vst [vmem:[#allocation3] sm:$0xff] 0.0
      %68 = vst [vmem:[#allocation3 + $0x8] sm:$0xff] 0.0
    $region45: #{noisy_linear_forward.1} parent=1 // pred_fallthru
      _
    %v69 = vld [vmem:[%s0] sm:$0xf]
    %v70 = vld [vmem:[%s0 + $0x4] sm:$0xf]
    %v71 = vld [vmem:[#allocation2] sm:$0xff]
    %v72 = vld [vmem:[#allocation2 + $0x8] sm:$0xff]
    %v73 = vld [vmem:[#allocation4] sm:$0xf]
    %v74 = vld [vmem:[#allocation4 + $0x4] sm:$0xf]
    %v75 = vld [vmem:[#allocation4 + $0x8] sm:$0xf]
    %v76 = vld [vmem:[#allocation4 + $0xc] sm:$0xf]
    %v77 = vld [vmem:[#allocation4 + $0x10] sm:$0xf]
    %v78 = vld [vmem:[#allocation4 + $0x14] sm:$0xf]
    %v79 = vld [vmem:[#allocation4 + $0x18] sm:$0xf]
    %v80 = vld [vmem:[#allocation4 + $0x1c] sm:$0xf]
    %v81 = vld [vmem:[#allocation4 + $0x20] sm:$0xf]
    %v82 = vld [vmem:[#allocation4 + $0x24] sm:$0xf]
    %v83 = vld [vmem:[#allocation4 + $0x28] sm:$0xf]
    %v84 = vld [vmem:[#allocation4 + $0x2c] sm:$0xf]
    %v85 = vld [vmem:[#allocation4 + $0x30] sm:$0xf]
    %v86 = vld [vmem:[#allocation4 + $0x34] sm:$0xf]
    %v87 = vld [vmem:[#allocation4 + $0x38] sm:$0xf]
    %v88 = vld [vmem:[#allocation4 + $0x3c] sm:$0xf]
    %v91 = vunpack.c.l.b16 %v69
    %v92 = vunpack.c.l.b16 %v70
    %v93 = vpack.c.b16 %v92, %v91
    %v111 = vunpack.c.l.b16 %v73
    %v112 = vunpack.c.l.b16 %v74
    %v113 = vunpack.c.l.b16 %v75
    %v114 = vunpack.c.l.b16 %v76
    %v115 = vunpack.c.l.b16 %v77
    %v116 = vunpack.c.l.b16 %v78
    %v117 = vunpack.c.l.b16 %v79
    %v118 = vunpack.c.l.b16 %v80
    %v119 = vunpack.c.l.b16 %v81
    %v120 = vunpack.c.l.b16 %v82
    %v121 = vunpack.c.l.b16 %v83
    %v122 = vunpack.c.l.b16 %v84
    %v123 = vunpack.c.l.b16 %v85
    %v124 = vunpack.c.l.b16 %v86
    %v125 = vunpack.c.l.b16 %v87
    %v126 = vunpack.c.l.b16 %v88
    %v127 = vpack.c.b16 %v112, %v111
    %v128 = vpack.c.b16 %v114, %v113
    %v129 = vpack.c.b16 %v116, %v115
    %v130 = vpack.c.b16 %v118, %v117
    %v131 = vpack.c.b16 %v120, %v119
    %v132 = vpack.c.b16 %v122, %v121
    %v133 = vpack.c.b16 %v124, %v123
    %v134 = vpack.c.b16 %v126, %v125
    %143 = vmatpush.bf16.msra.mxu0 %v134
    %144 = vmatpush.bf16.msra.mxu0 %v133
    %145 = vmatpush.bf16.msra.mxu0 %v132
    %146 = vmatpush.bf16.msra.mxu0 %v131
    %147 = vmatpush.bf16.msra.mxu0 %v130
    %148 = vmatpush.bf16.msra.mxu0 %v129
    %149 = vmatpush.bf16.msra.mxu0 %v128
    %150 = vmatpush.bf16.msra.mxu0 %v127
    %151 = vmatmul.bf16.gmra.mxu0 %v93
    %v152 = vpop.f32.mrf.mxu0
    %v153 = vadd.f32 0.0, %v152
    %v154 = vpop.f32.mrf.mxu0
    %v155 = vadd.f32 0.0, %v154
    %156 = vdwg.mxu0
    %v157 = vadd.f32 %v71, %v153
    %v158 = vadd.f32 %v72, %v155
    %159 = vst [vmem:[#allocation2] sm:$0xff] %v157
    %160 = vst [vmem:[#allocation2 + $0x8] sm:$0xff] %v158
    %v161 = vld [vmem:[%s3] sm:$0x1]
    %v163 = vpack.i.b16 %v161, %v161
    %v165 = vperm.slane %v163, 0
    %v166 = vunpack.c.l.bf16 %v69
    %v167 = vunpack.c.l.bf16 %v70
    %v168 = vunpack.c.l.bf16 %v165
    %v169 = vmul.f32 %v166, %v168
    %v170 = vmul.f32 %v167, %v168
    %v171 = vpack.c.bf16 %v170, %v169
    %v172 = vld [vmem:[#allocation3] sm:$0xff]
    %v173 = vld [vmem:[#allocation3 + $0x8] sm:$0xff]
    %v174 = vld [vmem:[#allocation6] sm:$0xf]
    %v175 = vld [vmem:[#allocation6 + $0x4] sm:$0xf]
    %v176 = vld [vmem:[#allocation6 + $0x8] sm:$0xf]
    %v177 = vld [vmem:[#allocation6 + $0xc] sm:$0xf]
    %v178 = vld [vmem:[#allocation6 + $0x10] sm:$0xf]
    %v179 = vld [vmem:[#allocation6 + $0x14] sm:$0xf]
    %v180 = vld [vmem:[#allocation6 + $0x18] sm:$0xf]
    %v181 = vld [vmem:[#allocation6 + $0x1c] sm:$0xf]
    %v182 = vld [vmem:[#allocation6 + $0x20] sm:$0xf]
    %v183 = vld [vmem:[#allocation6 + $0x24] sm:$0xf]
    %v184 = vld [vmem:[#allocation6 + $0x28] sm:$0xf]
    %v185 = vld [vmem:[#allocation6 + $0x2c] sm:$0xf]
    %v186 = vld [vmem:[#allocation6 + $0x30] sm:$0xf]
    %v187 = vld [vmem:[#allocation6 + $0x34] sm:$0xf]
    %v188 = vld [vmem:[#allocation6 + $0x38] sm:$0xf]
    %v189 = vld [vmem:[#allocation6 + $0x3c] sm:$0xf]
    %v206 = vunpack.c.l.b16 %v174
    %v207 = vunpack.c.l.b16 %v175
    %v208 = vunpack.c.l.b16 %v176
    %v209 = vunpack.c.l.b16 %v177
    %v210 = vunpack.c.l.b16 %v178
    %v211 = vunpack.c.l.b16 %v179
    %v212 = vunpack.c.l.b16 %v180
    %v213 = vunpack.c.l.b16 %v181
    %v214 = vunpack.c.l.b16 %v182
    %v215 = vunpack.c.l.b16 %v183
    %v216 = vunpack.c.l.b16 %v184
    %v217 = vunpack.c.l.b16 %v185
    %v218 = vunpack.c.l.b16 %v186
    %v219 = vunpack.c.l.b16 %v187
    %v220 = vunpack.c.l.b16 %v188
    %v221 = vunpack.c.l.b16 %v189
    %v222 = vpack.c.b16 %v207, %v206
    %v223 = vpack.c.b16 %v209, %v208
    %v224 = vpack.c.b16 %v211, %v210
    %v225 = vpack.c.b16 %v213, %v212
    %v226 = vpack.c.b16 %v215, %v214
    %v227 = vpack.c.b16 %v217, %v216
    %v228 = vpack.c.b16 %v219, %v218
    %v229 = vpack.c.b16 %v221, %v220
    %238 = vmatpush.bf16.msra.mxu0 %v229
    %239 = vmatpush.bf16.msra.mxu0 %v228
    %240 = vmatpush.bf16.msra.mxu0 %v227
    %241 = vmatpush.bf16.msra.mxu0 %v226
    %242 = vmatpush.bf16.msra.mxu0 %v225
    %243 = vmatpush.bf16.msra.mxu0 %v224
    %244 = vmatpush.bf16.msra.mxu0 %v223
    %245 = vmatpush.bf16.msra.mxu0 %v222
    %246 = vmatmul.bf16.gmra.mxu0 %v171
    %v247 = vpop.f32.mrf.mxu0
    %v248 = vadd.f32 0.0, %v247
    %v249 = vpop.f32.mrf.mxu0
    %v250 = vadd.f32 0.0, %v249
    %251 = vdwg.mxu0
    %v252 = vadd.f32 %v172, %v248
    %v253 = vadd.f32 %v173, %v250
    %254 = vst [vmem:[#allocation3] sm:$0xff] %v252
    %255 = vst [vmem:[#allocation3 + $0x8] sm:$0xff] %v253
    // Predicated region
    $region46: #{noisy_linear_forward.1} parent=1 // pred_check
      %p256 = pneg %p61
    $region47: #{noisy_linear_forward.1} parent=1 // pred_check_branch
      %258 = sbr.rel (%p256) target = $region49
    $region48: #{noisy_linear_forward.1} parent=1 // pred_region
      %v259 = vld [vmem:[%s5] sm:$0x1]
      %v260 = vld [vmem:[%s6] sm:$0x1]
      %v261 = vld [vmem:[%s7] sm:$0x1]
      %v262 = vmul.f32 %v260, %v261
      %v263 = vadd.f32 %v259, %v262
      %v264 = vld [vmem:[#allocation2] sm:$0xff]
      %v265 = vld [vmem:[#allocation2 + $0x8] sm:$0xff]
      %v266 = vld [vmem:[#allocation3] sm:$0xff]
      %v267 = vld [vmem:[#allocation3 + $0x8] sm:$0xff]
      %v268 = vld [vmem:[%s4] sm:$0x1]
      %v270 = vperm.slane %v268, 0
      %v272 = vmul.f32 %v266, %v270
      %v273 = vmul.f32 %v267, %v270
      %v274 = vadd.f32 %v264, %v272
      %v275 = vadd.f32 %v265, %v273
      %v277 = vperm.slane %v263, 0
      %v279 = vadd.f32 %v274, %v277
      %v280 = vadd.f32 %v275, %v277
      %281 = vst [vmem:[%s8] sm:$0xff] %v279
      %282 = vst [vmem:[%s8 + $0x8] sm:$0xff] %v280
    $region49: #{noisy_linear_forward.1} parent=1 // pred_fallthru
      _
    // Predicated region
    $region50: #{noisy_linear_forward.1} parent=1 // pred_check
      _
    $region51: #{noisy_linear_forward.1} parent=1 // pred_check_branch
      %284 = sbr.rel (0) target = $region53
    $region52: #{noisy_linear_forward.1} parent=1 // pred_region
      _
    $region53: #{noisy_linear_forward.1} parent=1 // pred_fallthru
      _
    // Predicated region
    $region54: #{noisy_linear_forward.1} parent=1 // pred_check
      _
    $region55: #{noisy_linear_forward.1} parent=1 // pred_check_branch
      %286 = sbr.rel (0) target = $region57
    $region56: #{noisy_linear_forward.1} parent=1 // pred_region
      _
    $region57: #{noisy_linear_forward.1} parent=1 // pred_fallthru
      _
    %287 = vsyncpa [#allocation5], 1
    %288 = vsyncpa [#allocation7], 1

</llo_original>
